<compile_context>
chip_gen: v6e
topology: v6e:2x2x1
jax: 0.10.0
libtpu: 0.0.40
codegen_flags: <defaults>
</compile_context>

<pallas_src>
import math

import jax
import jax.numpy as jnp
from jax.experimental import pallas as pl
from jax.experimental.pallas import tpu as pltpu

LN_EPS = 1e-5


def _patch_merging_kernel(x_ref, we_ref, wo_ref, b_ref, o_ref):
    """Fused 2x2 merge + LayerNorm + (4C -> Cout) projection, split-K.

    x_ref : (tn, 2, W2, 2C)  even/odd image-row pair per merged output row
    we_ref: (2C, Cp) bf16    gamma-folded weight rows for the even half [x0|x2]
    wo_ref: (2C, Cp) bf16    gamma-folded weight rows for the odd  half [x1|x3]
    b_ref : (1, Cp)  f32     beta @ W  (LayerNorm shift folded into the bias)
    o_ref : (tn*W2, Cp)
    """
    tn, _, w2, c2 = x_ref.shape
    rows = tn * w2
    inv_c4 = 1.0 / (2 * c2)

    # even h row -> [x0 | x2] channels ; odd h row -> [x1 | x3] channels
    xe = x_ref[:, 0, :, :].reshape(rows, c2).astype(jnp.float32)
    xo = x_ref[:, 1, :, :].reshape(rows, c2).astype(jnp.float32)

    # LayerNorm statistics over the virtual 4C row via partial sums
    # (no lane-axis concat).  Affine is folded into the weight / bias.
    mean = (jnp.sum(xe, -1, keepdims=True)
            + jnp.sum(xo, -1, keepdims=True)) * inv_c4
    xe_c = xe - mean
    xo_c = xo - mean
    var = (jnp.sum(xe_c * xe_c, -1, keepdims=True)
           + jnp.sum(xo_c * xo_c, -1, keepdims=True)) * inv_c4
    inv_std = jax.lax.rsqrt(var + LN_EPS)

    xne = (xe_c * inv_std).astype(jnp.bfloat16)
    xno = (xo_c * inv_std).astype(jnp.bfloat16)

    # Split-K matmul on the MXU, f32 accumulation.
    acc = jnp.dot(xne, we_ref[...], preferred_element_type=jnp.float32)
    acc += jnp.dot(xno, wo_ref[...], preferred_element_type=jnp.float32)
    acc += b_ref[...]
    o_ref[...] = acc.astype(o_ref.dtype)


def _vmem_capacity_bytes():
    try:
        return int(pltpu.get_tpu_info().vmem_capacity_bytes)
    except Exception:
        return 64 * 1024 * 1024          # conservative (v7x-sized) fallback


def _per_row_vmem(c4, cp, in_bytes, out_bytes):
    # double-buffered in/out block bytes + in-kernel temporaries per merged
    # row (xe/xo + centered copies in f32, xne/xno bf16, acc f32).
    return 2 * c4 * in_bytes + 2 * cp * out_bytes + 8 * c4 + 4 * cp


def _pick_tn(m2, w2, c4, cp, in_bytes, out_bytes, rows_target, budget,
             prefer_even_steps):
    """#row-pairs per grid step s.t. (tn*W2) % 8 == 0 and the tile fits VMEM."""
    g = 8 // math.gcd(w2, 8)      # granularity for 8-aligned output blocks
    if m2 <= g:
        return m2                 # single block; block rows == N (legal)
    per_row = _per_row_vmem(c4, cp, in_bytes, out_bytes)
    fixed = c4 * cp * 2 + cp * 4          # single-buffered bf16 W + f32 bias
    rows_cap = max(w2, (budget - fixed) // per_row)
    rows = min(rows_target, rows_cap)
    tn = max(g, (int(rows) // w2 // g) * g)
    tn = min(tn, m2)
    n_steps = pl.cdiv(m2, tn)
    # Keep >= 2 steps so "parallel" can shard the axis across TensorCores,
    # and prefer an even step count on 2-TC (v7x) parts for load balance.
    if m2 >= 2 * g:
        n_steps = max(n_steps, 2)
        if prefer_even_steps and n_steps % 2 == 1 and m2 >= (n_steps + 1) * g:
            n_steps += 1
    per_step = pl.cdiv(m2, n_steps)
    tn = min(m2, ((per_step + g - 1) // g) * g)
    return tn


def patch_merging_forward(x, H, W, gamma, beta, reduction_weight, *,
                          rows_target=None):
    """Semantics of PatchMerging.forward.

    x: (B, H*W, C)  (f32 or bf16; output keeps x.dtype)
    gamma, beta: (4C,) LayerNorm affine
    reduction_weight: (2C, 4C)  PyTorch nn.Linear(4C, 2C, bias=False).weight
    returns: (B, ceil(H/2)*ceil(W/2), 2C)
    """
    B, L, C = x.shape
    assert L == H * W, "input feature has wrong size"
    xr = x.reshape(B, H, W, C)

    # zero-pad odd spatial dims on the high side (matches F.pad in the spec).
    # TODO(synk): for odd H/W this jnp.pad is a full HBM read+write of the
    # activation before the kernel runs (~2x input traffic); it could be
    # folded into the kernel with a masked ragged tail if odd-dim stages
    # ever matter.
    pad_h, pad_w = H % 2, W % 2
    if pad_h or pad_w:
        xr = jnp.pad(xr, ((0, 0), (0, pad_h), (0, pad_w), (0, 0)))
    Hp, Wp = H + pad_h, W + pad_w
    H2, W2 = Hp // 2, Wp // 2
    M2 = B * H2
    N = M2 * W2
    c2 = 2 * C
    c4 = 4 * C
    c2_out = 2 * C
    # Lane-pad the output only when 2C < 128 (sub-128 masked stores hurt);
    # for 2C >= 128 the block last-dim equals the full array dim, so no
    # wrapper-slice HBM copy is needed.
    cp = 128 if c2_out < 128 else c2_out

    # free row-major reshape: (B, Hp, Wp, C) -> (B*H2, 2, W2, 2C)
    xm = xr.reshape(M2, 2, W2, c2)

    # ---- one-time parameter prep (tiny) ----------------------------------
    w_t = reduction_weight.T.astype(jnp.float32)              # (4C, 2C)
    w_fold = gamma.astype(jnp.float32)[:, None] * w_t          # fold LN scale
    # even-h kernel channels = [x0 | x2]; odd-h = [x1 | x3]
    w_e = jnp.concatenate([w_fold[0:C], w_fold[2 * C:3 * C]], axis=0)
    w_o = jnp.concatenate([w_fold[C:2 * C], w_fold[3 * C:4 * C]], axis=0)
    bias = beta.astype(jnp.float32) @ w_t                       # fold LN shift
    if cp != c2_out:
        w_e = jnp.pad(w_e, ((0, 0), (0, cp - c2_out)))
        w_o = jnp.pad(w_o, ((0, 0), (0, cp - c2_out)))
        bias = jnp.pad(bias, (0, cp - c2_out))
    w_e = w_e.astype(jnp.bfloat16)                              # bf16 MXU operand
    w_o = w_o.astype(jnp.bfloat16)
    bias = bias.reshape(1, cp).astype(jnp.float32)

    # ---- generation-aware tiling -----------------------------------------
    capacity = _vmem_capacity_bytes()          # 64 MiB v7x, 128 MiB v5e/v6e
    budget = capacity // 2                     # tile budget (leaves temp room)
    if rows_target is None:
        rows_target = 2048 if capacity >= 96 * 1024 * 1024 else 1024
    prefer_even_steps = capacity < 96 * 1024 * 1024   # v7x: 2 TCs share grid
    in_bytes = jnp.dtype(x.dtype).itemsize
    out_bytes = in_bytes
    tn = _pick_tn(M2, W2, c4, cp, in_bytes, out_bytes, rows_target, budget,
                  prefer_even_steps)
    n_steps = pl.cdiv(M2, tn)
    block_rows = tn * W2

    est = (c4 * cp * 2 + cp * 4
           + block_rows * _per_row_vmem(c4, cp, in_bytes, out_bytes))
    vmem_limit = int(min(capacity * 7 // 10,
                         max(32 * 1024 * 1024, est * 14 // 10)))

    # NOTE: when M2 % tn != 0 the last grid step reads past the logical end
    # of xm.  LN / rsqrt runs on those garbage rows, but each output row
    # depends only on its own input row and Pallas drops out-of-range output
    # rows, so valid results are unaffected.
    out = pl.pallas_call(
        _patch_merging_kernel,
        out_shape=jax.ShapeDtypeStruct((N, cp), x.dtype),
        grid_spec=pltpu.PrefetchScalarGridSpec(
            num_scalar_prefetch=0,
            grid=(n_steps,),
            in_specs=[
                pl.BlockSpec((tn, 2, W2, c2), lambda i: (i, 0, 0, 0)),
                # grid-invariant operands: DMA'd once, single-buffered
                pl.BlockSpec((c2, cp), lambda i: (0, 0),
                             pipeline_mode=pl.Buffered(1)),
                pl.BlockSpec((c2, cp), lambda i: (0, 0),
                             pipeline_mode=pl.Buffered(1)),
                pl.BlockSpec((1, cp), lambda i: (0, 0),
                             pipeline_mode=pl.Buffered(1)),
            ],
            out_specs=pl.BlockSpec((block_rows, cp), lambda i: (i, 0)),
        ),
        compiler_params=pltpu.CompilerParams(
            dimension_semantics=("parallel",),
            vmem_limit_bytes=vmem_limit,
        ),
    )(xm, w_e, w_o, bias)

    if cp != c2_out:
        out = out[:, :c2_out]          # only when 2C < 128
    return out.reshape(B, H2 * W2, c2_out)


def _reference(x, H, W, gamma, beta, reduction_weight):
    """Pure-JAX f32 mirror of the PyTorch module."""
    B, L, C = x.shape
    xr = x.reshape(B, H, W, C).astype(jnp.float32)
    if H % 2 or W % 2:
        xr = jnp.pad(xr, ((0, 0), (0, H % 2), (0, W % 2), (0, 0)))
    x0 = xr[:, 0::2, 0::2, :]
    x1 = xr[:, 1::2, 0::2, :]
    x2 = xr[:, 0::2, 1::2, :]
    x3 = xr[:, 1::2, 1::2, :]
    xm = jnp.concatenate([x0, x1, x2, x3], -1).reshape(B, -1, 4 * C)
    mu = jnp.mean(xm, -1, keepdims=True)
    var = jnp.mean((xm - mu) ** 2, -1, keepdims=True)
    xn = (xm - mu) / jnp.sqrt(var + LN_EPS) * gamma + beta
    return xn @ reduction_weight.T.astype(jnp.float32)


if __name__ == "__main__":
    fwd = jax.jit(patch_merging_forward, static_argnums=(1, 2))
    key = jax.random.PRNGKey(0)
    k1, k2, k3, k4, k5, k6 = jax.random.split(key, 6)

    # Case 1: B=2, dim C=32, H=W=16  (2C=64 < 128 -> lane-padded output path)
    B, H, W, C = 2, 16, 16, 32
    x = jax.random.normal(k1, (B, H * W, C), dtype=jnp.float32)
    rw = jax.random.normal(k2, (2 * C, 4 * C), dtype=jnp.float32) * 0.02
    gamma = 1.0 + 0.1 * jax.random.normal(k3, (4 * C,), dtype=jnp.float32)
    beta = 0.05 * jax.random.normal(k4, (4 * C,), dtype=jnp.float32)
    out = jax.block_until_ready(fwd(x, H, W, gamma, beta, rw))
    exp = _reference(x, H, W, gamma, beta, rw)
    assert out.shape == (B, (H // 2) * (W // 2), 2 * C), out.shape
    # bf16 MXU operands -> slightly looser tolerance than pure f32
    assert jnp.allclose(out, exp, atol=2e-2, rtol=2e-2), \
        float(jnp.max(jnp.abs(out - exp)))

    # Case 2: odd H exercises the high-side spatial zero-pad path.
    Ho, Wo = 15, 16
    x2 = jax.random.normal(k5, (B, Ho * Wo, C), dtype=jnp.float32)
    out2 = jax.block_until_ready(fwd(x2, Ho, Wo, gamma, beta, rw))
    exp2 = _reference(x2, Ho, Wo, gamma, beta, rw)
    assert out2.shape == (B, ((Ho + 1) // 2) * (Wo // 2), 2 * C), out2.shape
    assert jnp.allclose(out2, exp2, atol=2e-2, rtol=2e-2), \
        float(jnp.max(jnp.abs(out2 - exp2)))

    # Case 3: C=96 (2C=192 >= 128, not a multiple of 128) -> unpadded output
    # path, no wrapper slice copy.
    B3, H3, W3, C3 = 2, 8, 8, 96
    ka, kb, kc, kd = jax.random.split(k6, 4)
    x3 = jax.random.normal(ka, (B3, H3 * W3, C3), dtype=jnp.float32)
    rw3 = jax.random.normal(kb, (2 * C3, 4 * C3), dtype=jnp.float32) * 0.02
    gamma3 = 1.0 + 0.1 * jax.random.normal(kc, (4 * C3,), dtype=jnp.float32)
    beta3 = 0.05 * jax.random.normal(kd, (4 * C3,), dtype=jnp.float32)
    out3 = jax.block_until_ready(fwd(x3, H3, W3, gamma3, beta3, rw3))
    exp3 = _reference(x3, H3, W3, gamma3, beta3, rw3)
    assert out3.shape == (B3, (H3 // 2) * (W3 // 2), 2 * C3), out3.shape
    assert jnp.allclose(out3, exp3, atol=2e-2, rtol=2e-2), \
        float(jnp.max(jnp.abs(out3 - exp3)))

    print("KERNEL_OK")
</pallas_src>

<mosaic_0001>
module attributes {stable_mosaic.version = 11 : i64} {
  func.func @_patch_merging_kernel(%arg0: i32, %arg1: memref<8x2x8x64xf32, #tpu.memory_space<vmem>>, %arg2: memref<64x128xbf16, #tpu.memory_space<vmem>>, %arg3: memref<64x128xbf16, #tpu.memory_space<vmem>>, %arg4: memref<1x128xf32, #tpu.memory_space<vmem>>, %arg5: memref<64x128xf32, #tpu.memory_space<vmem>>) attributes {dimension_semantics = [#tpu.dimension_semantics<parallel>], iteration_bounds = array<i64: 2>, scalar_prefetch = 0 : i64, scratch_operands = 0 : i64, tpu.core_type = #tpu.core_type<tc>, window_params = [{transform_indices = @transform_0, window_bounds = array<i64: 8, 2, 8, 64>}, {pipeline_mode = #tpu.pipeline_mode<synchronous>, transform_indices = @transform_1, window_bounds = array<i64: 64, 128>}, {pipeline_mode = #tpu.pipeline_mode<synchronous>, transform_indices = @transform_2, window_bounds = array<i64: 64, 128>}, {pipeline_mode = #tpu.pipeline_mode<synchronous>, transform_indices = @transform_3, window_bounds = array<i64: 1, 128>}, {transform_indices = @transform_4, window_bounds = array<i64: 64, 128>}]} {
    %c0 = arith.constant 0 : index
    %c0_0 = arith.constant 0 : index
    %c0_1 = arith.constant 0 : index
    %c0_2 = arith.constant 0 : index
    %0 = vector.load %arg1[%c0, %c0_0, %c0_1, %c0_2] : memref<8x2x8x64xf32, #tpu.memory_space<vmem>>, vector<8x1x8x64xf32>
    %1 = vector.shape_cast %0 : vector<8x1x8x64xf32> to vector<8x8x64xf32>
    %2 = vector.shape_cast %1 : vector<8x8x64xf32> to vector<64x64xf32>
    %c0_3 = arith.constant 0 : index
    %c1 = arith.constant 1 : index
    %c0_4 = arith.constant 0 : index
    %c0_5 = arith.constant 0 : index
    %3 = vector.load %arg1[%c0_3, %c1, %c0_4, %c0_5] : memref<8x2x8x64xf32, #tpu.memory_space<vmem>>, vector<8x1x8x64xf32>
    %4 = vector.shape_cast %3 : vector<8x1x8x64xf32> to vector<8x8x64xf32>
    %5 = vector.shape_cast %4 : vector<8x8x64xf32> to vector<64x64xf32>
    %cst = arith.constant dense<0.000000e+00> : vector<64xf32>
    %6 = vector.multi_reduction <add>, %2, %cst [1] : vector<64x64xf32> to vector<64xf32>
    %7 = vector.shape_cast %6 : vector<64xf32> to vector<64x1xf32>
    %cst_6 = arith.constant dense<0.000000e+00> : vector<64xf32>
    %8 = vector.multi_reduction <add>, %5, %cst_6 [1] : vector<64x64xf32> to vector<64xf32>
    %9 = vector.shape_cast %8 : vector<64xf32> to vector<64x1xf32>
    %10 = arith.addf %7, %9 : vector<64x1xf32>
    %cst_7 = arith.constant 7.812500e-03 : f32
    %11 = vector.broadcast %cst_7 : f32 to vector<64x1xf32>
    %12 = arith.mulf %10, %11 : vector<64x1xf32>
    %13 = vector.broadcast %12 : vector<64x1xf32> to vector<64x64xf32>
    %14 = arith.subf %2, %13 : vector<64x64xf32>
    %15 = vector.broadcast %12 : vector<64x1xf32> to vector<64x64xf32>
    %16 = arith.subf %5, %15 : vector<64x64xf32>
    %17 = arith.mulf %14, %14 : vector<64x64xf32>
    %cst_8 = arith.constant dense<0.000000e+00> : vector<64xf32>
    %18 = vector.multi_reduction <add>, %17, %cst_8 [1] : vector<64x64xf32> to vector<64xf32>
    %19 = vector.shape_cast %18 : vector<64xf32> to vector<64x1xf32>
    %20 = arith.mulf %16, %16 : vector<64x64xf32>
    %cst_9 = arith.constant dense<0.000000e+00> : vector<64xf32>
    %21 = vector.multi_reduction <add>, %20, %cst_9 [1] : vector<64x64xf32> to vector<64xf32>
    %22 = vector.shape_cast %21 : vector<64xf32> to vector<64x1xf32>
    %23 = arith.addf %19, %22 : vector<64x1xf32>
    %cst_10 = arith.constant 7.812500e-03 : f32
    %24 = vector.broadcast %cst_10 : f32 to vector<64x1xf32>
    %25 = arith.mulf %23, %24 : vector<64x1xf32>
    %cst_11 = arith.constant 9.99999974E-6 : f32
    %26 = vector.broadcast %cst_11 : f32 to vector<64x1xf32>
    %27 = arith.addf %25, %26 : vector<64x1xf32>
    %28 = math.rsqrt %27 : vector<64x1xf32>
    %29 = vector.broadcast %28 : vector<64x1xf32> to vector<64x64xf32>
    %30 = arith.mulf %14, %29 : vector<64x64xf32>
    %31 = arith.truncf %30 : vector<64x64xf32> to vector<64x64xbf16>
    %32 = vector.broadcast %28 : vector<64x1xf32> to vector<64x64xf32>
    %33 = arith.mulf %16, %32 : vector<64x64xf32>
    %34 = arith.truncf %33 : vector<64x64xf32> to vector<64x64xbf16>
    %c0_12 = arith.constant 0 : index
    %c0_13 = arith.constant 0 : index
    %35 = vector.load %arg2[%c0_12, %c0_13] : memref<64x128xbf16, #tpu.memory_space<vmem>>, vector<64x128xbf16>
    %cst_14 = arith.constant dense<0.000000e+00> : vector<64x128xf32>
    %36 = tpu.matmul %31, %35, %cst_14 {dimension_numbers = #tpu.dot_dimension_numbers<[1], [0], [0], [1], [0, 0, 1, 1], [], []>} : vector<64x64xbf16>, vector<64x128xbf16>, vector<64x128xf32> -> vector<64x128xf32>
    %c0_15 = arith.constant 0 : index
    %c0_16 = arith.constant 0 : index
    %37 = vector.load %arg3[%c0_15, %c0_16] : memref<64x128xbf16, #tpu.memory_space<vmem>>, vector<64x128xbf16>
    %cst_17 = arith.constant dense<0.000000e+00> : vector<64x128xf32>
    %38 = tpu.matmul %34, %37, %cst_17 {dimension_numbers = #tpu.dot_dimension_numbers<[1], [0], [0], [1], [0, 0, 1, 1], [], []>} : vector<64x64xbf16>, vector<64x128xbf16>, vector<64x128xf32> -> vector<64x128xf32>
    %39 = arith.addf %36, %38 : vector<64x128xf32>
    %c0_18 = arith.constant 0 : index
    %c0_19 = arith.constant 0 : index
    %40 = vector.load %arg4[%c0_18, %c0_19] : memref<1x128xf32, #tpu.memory_space<vmem>>, vector<1x128xf32>
    %41 = vector.broadcast %40 : vector<1x128xf32> to vector<64x128xf32>
    %42 = arith.addf %39, %41 : vector<64x128xf32>
    %c0_20 = arith.constant 0 : index
    %c0_21 = arith.constant 0 : index
    %43 = vector.load %arg5[%c0_20, %c0_21] : memref<64x128xf32, #tpu.memory_space<vmem>>, vector<64x128xf32>
    tpu.vector_store %arg5[%c0_20, %c0_21], %42 {strides = array<i32>} : memref<64x128xf32, #tpu.memory_space<vmem>>, vector<64x128xf32>,
    return
  }
  func.func @transform_0(%arg0: i32) -> (i32, i32, i32, i32) {
    %c0_i32 = arith.constant 0 : i32
    %c0_i32_0 = arith.constant 0 : i32
    %c0_i32_1 = arith.constant 0 : i32
    %c0_i32_2 = arith.constant 0 : i32
    return %arg0, %c0_i32, %c0_i32_0, %c0_i32_1 : i32, i32, i32, i32
  }
  func.func @transform_1(%arg0: i32) -> (i32, i32) {
    %c0_i32 = arith.constant 0 : i32
    %c0_i32_0 = arith.constant 0 : i32
    %c0_i32_1 = arith.constant 0 : i32
    return %c0_i32, %c0_i32_0 : i32, i32
  }
  func.func @transform_2(%arg0: i32) -> (i32, i32) {
    %c0_i32 = arith.constant 0 : i32
    %c0_i32_0 = arith.constant 0 : i32
    %c0_i32_1 = arith.constant 0 : i32
    return %c0_i32, %c0_i32_0 : i32, i32
  }
  func.func @transform_3(%arg0: i32) -> (i32, i32) {
    %c0_i32 = arith.constant 0 : i32
    %c0_i32_0 = arith.constant 0 : i32
    %c0_i32_1 = arith.constant 0 : i32
    return %c0_i32, %c0_i32_0 : i32, i32
  }
  func.func @transform_4(%arg0: i32) -> (i32, i32) {
    %c0_i32 = arith.constant 0 : i32
    %c0_i32_0 = arith.constant 0 : i32
    return %arg0, %c0_i32 : i32, i32
  }
}

</mosaic_0001>

<llo_original>
// kernel: patch_merging_forward.1
$region0: #{patch_merging_forward.1}
  #allocation0 [shape = 'u32[]', space=smem, size = 0x4, offset = 0x4, fixed_abs, tag = 'smem constant byte address 0x4 - core index']
  #allocation1 [shape = 'u32[144,128]{1,0:T(1,128)}', space=vmem, size = 0x12000, scoped, tag = 'internal scratch']
  %s0 = inlined_call_operand.vmem [shape: f32[16,2,8,64], index: 0, kind: input, shape index: {}]
  %s1 = inlined_call_operand.vmem [shape: bf16[64,128], index: 1, kind: input, shape index: {}]
  %s2 = inlined_call_operand.vmem [shape: bf16[64,128], index: 2, kind: input, shape index: {}]
  %s3 = inlined_call_operand.vmem [shape: f32[1,128], index: 3, kind: input, shape index: {}]
  %s4 = inlined_call_operand.hbm [shape: f32[128,128], index: 4, kind: output, shape index: {}]
  %s5 = sld [smem:[#allocation0]]
  $region49: #{patch_merging_forward.1} parent=0
    _
  %s7 = ssub.s32 1, %s5
  %s8 = scalar_select 0, %s7, %s5
  $region1: #{patch_merging_forward.1} parent=0
    #allocation2 [shape = 'u8[65536]{0}', space=vmem, size = 0x10000, scoped, tag = 'output window, operand 0']
    #allocation3 [shape = 's32[2]{0}', space=sflag, size = 0x8, scoped, tag = 'scoped memory for patch_merging_forward.1']
    %9 = vsyncpa [#allocation3], 0
    %s10 = scalar_lea.sflag [#allocation3], 1
    %11 = vsyncpa %s10, 0
    loop: start=0, step=1, limit=4
    $region2: #{patch_merging_forward.1} parent=1 // loop_pre_header
      _
    $region3: #{patch_merging_forward.1} parent=1 // loop_header
      %s13 = sphi 0, %s17
      %p14 = scmp.ge.s32.totalorder %s13, 4
      %s23 = sphi 0, %s25
      %s26 = sphi 0, %s23
      %s27 = sphi 0, %s26
      %s43 = sphi 0, %s27
      %s47 = sphi 0, %s47
      %s49 = sphi 0, %s47
      %s50 = sphi 0, %s49
      %s64 = sphi 0, %s50
      %s68 = sphi 0, %s68
      %s70 = sphi 0, %s68
      %s71 = sphi 0, %s70
      %s85 = sphi 0, %s71
      %s89 = sphi 0, %s89
      %s91 = sphi 0, %s89
      %s92 = sphi 0, %s91
      %s106 = sphi 0, %s92
      %s112 = sphi 0, %s114
      %s115 = sphi 0, %s112
      %s116 = sphi 0, %s115
      %s132 = sphi 0, %s116
    $region4: #{patch_merging_forward.1} parent=1 // loop_header_branch
      %16 = sbr.rel (%p14) target = $region8
    $region5: #{patch_merging_forward.1} parent=1 // loop_body
      %s18 = ssub.s32 %s13, 1
      %s19 = ssub.s32 %s13, 2
      %s20 = sadd.s32 %s13, 1
      %s21 = ssub.s32 %s13, %s20
      %p22 = scmp.eq.s32.totalorder %s21, 0
      %s24 = sadd.s32 %s23, 1
      %s25 = scalar_select %p22, %s23, %s24
      %p28 = pneg %p22
      %p29 = scmp.eq.s32.totalorder %s13, 1
      %p30 = por %p28, %p29
      %p31 = scmp.ne.s32.totalorder %s23, %s26
      %p32 = scmp.eq.s32.totalorder %s13, 0
      %p33 = por %p31, %p32
      %p34 = scmp.ne.s32.totalorder %s23, %s26
      %p35 = scmp.eq.s32.totalorder %s18, 1
      %p36 = por %p34, %p35
      %p37 = scmp.ne.s32.totalorder %s26, %s27
      %p38 = scmp.eq.s32.totalorder %s18, 0
      %p39 = por %p37, %p38
      %p40 = scmp.ne.s32.totalorder %s26, %s27
      %p41 = scmp.eq.s32.totalorder %s19, 1
      %p42 = por %p40, %p41
      %p44 = scmp.ne.s32.totalorder %s27, %s43
      %p45 = scmp.eq.s32.totalorder %s19, 0
      %p46 = por %p44, %p45
      %s48 = sadd.s32 %s47, 1
      %p51 = scmp.eq.s32.totalorder %s13, 1
      %p52 = scmp.ne.s32.totalorder %s47, %s49
      %p53 = scmp.eq.s32.totalorder %s13, 0
      %p54 = por %p52, %p53
      %p55 = scmp.ne.s32.totalorder %s47, %s49
      %p56 = scmp.eq.s32.totalorder %s18, 1
      %p57 = por %p55, %p56
      %p58 = scmp.ne.s32.totalorder %s49, %s50
      %p59 = scmp.eq.s32.totalorder %s18, 0
      %p60 = por %p58, %p59
      %p61 = scmp.ne.s32.totalorder %s49, %s50
      %p62 = scmp.eq.s32.totalorder %s19, 1
      %p63 = por %p61, %p62
      %p65 = scmp.ne.s32.totalorder %s50, %s64
      %p66 = scmp.eq.s32.totalorder %s19, 0
      %p67 = por %p65, %p66
      %s69 = sadd.s32 %s68, 1
      %p72 = scmp.eq.s32.totalorder %s13, 1
      %p73 = scmp.ne.s32.totalorder %s68, %s70
      %p74 = scmp.eq.s32.totalorder %s13, 0
      %p75 = por %p73, %p74
      %p76 = scmp.ne.s32.totalorder %s68, %s70
      %p77 = scmp.eq.s32.totalorder %s18, 1
      %p78 = por %p76, %p77
      %p79 = scmp.ne.s32.totalorder %s70, %s71
      %p80 = scmp.eq.s32.totalorder %s18, 0
      %p81 = por %p79, %p80
      %p82 = scmp.ne.s32.totalorder %s70, %s71
      %p83 = scmp.eq.s32.totalorder %s19, 1
      %p84 = por %p82, %p83
      %p86 = scmp.ne.s32.totalorder %s71, %s85
      %p87 = scmp.eq.s32.totalorder %s19, 0
      %p88 = por %p86, %p87
      %s90 = sadd.s32 %s89, 1
      %p93 = scmp.eq.s32.totalorder %s13, 1
      %p94 = scmp.ne.s32.totalorder %s89, %s91
      %p95 = scmp.eq.s32.totalorder %s13, 0
      %p96 = por %p94, %p95
      %p97 = scmp.ne.s32.totalorder %s89, %s91
      %p98 = scmp.eq.s32.totalorder %s18, 1
      %p99 = por %p97, %p98
      %p100 = scmp.ne.s32.totalorder %s91, %s92
      %p101 = scmp.eq.s32.totalorder %s18, 0
      %p102 = por %p100, %p101
      %p103 = scmp.ne.s32.totalorder %s91, %s92
      %p104 = scmp.eq.s32.totalorder %s19, 1
      %p105 = por %p103, %p104
      %p107 = scmp.ne.s32.totalorder %s92, %s106
      %p108 = scmp.eq.s32.totalorder %s19, 0
      %p109 = por %p107, %p108
      %s110 = ssub.s32 %s13, %s20
      %p111 = scmp.eq.s32.totalorder %s110, 0
      %s113 = sadd.s32 %s112, 1
      %s114 = scalar_select %p111, %s112, %s113
      %p117 = pneg %p111
      %p118 = scmp.eq.s32.totalorder %s13, 1
      %p119 = por %p117, %p118
      %p120 = scmp.ne.s32.totalorder %s112, %s115
      %p121 = scmp.eq.s32.totalorder %s13, 0
      %p122 = por %p120, %p121
      %p123 = scmp.ne.s32.totalorder %s112, %s115
      %p124 = scmp.eq.s32.totalorder %s18, 1
      %p125 = por %p123, %p124
      %p126 = scmp.ne.s32.totalorder %s115, %s116
      %p127 = scmp.eq.s32.totalorder %s18, 0
      %p128 = por %p126, %p127
      %p129 = scmp.ne.s32.totalorder %s115, %s116
      %p130 = scmp.eq.s32.totalorder %s19, 1
      %p131 = por %p129, %p130
      %p133 = scmp.ne.s32.totalorder %s116, %s132
      %p134 = scmp.eq.s32.totalorder %s19, 0
      %p135 = por %p133, %p134
      %p136 = scmp.le.s32.totalorder 1, %s13
      %p137 = scmp.lt.s32.totalorder %s13, 3
      %p138 = pnand %p136, %p137
      %p139 = pneg %p138
      // Predicated region
      $region9: #{patch_merging_forward.1} parent=5 // pred_check
        _
      $region10: #{patch_merging_forward.1} parent=5 // pred_check_branch
        %141 = sbr.rel (%p138) target = $region12
      $region11: #{patch_merging_forward.1} parent=5 // pred_region
        %s142 = ssub.s32 %s13, 1
        // Predicated region
        $region13: #{patch_merging_forward.1} parent=11 // pred_check
          %p143 = pneg %p60
        $region14: #{patch_merging_forward.1} parent=11 // pred_check_branch
          %145 = sbr.rel (%p143) target = $region16
        $region15: #{patch_merging_forward.1} parent=11 // pred_region
          _
        $region16: #{patch_merging_forward.1} parent=11 // pred_fallthru
          _
        // Predicated region
        $region17: #{patch_merging_forward.1} parent=11 // pred_check
          %p146 = pneg %p81
        $region18: #{patch_merging_forward.1} parent=11 // pred_check_branch
          %148 = sbr.rel (%p146) target = $region20
        $region19: #{patch_merging_forward.1} parent=11 // pred_region
          _
        $region20: #{patch_merging_forward.1} parent=11 // pred_fallthru
          _
        // Predicated region
        $region21: #{patch_merging_forward.1} parent=11 // pred_check
          %p149 = pneg %p102
        $region22: #{patch_merging_forward.1} parent=11 // pred_check_branch
          %151 = sbr.rel (%p149) target = $region24
        $region23: #{patch_merging_forward.1} parent=11 // pred_region
          _
        $region24: #{patch_merging_forward.1} parent=11 // pred_fallthru
          _
      $region12: #{patch_merging_forward.1} parent=5 // pred_fallthru
        _
      %p152 = scmp.lt.s32.totalorder %s13, 2
      // Predicated region
      $region25: #{patch_merging_forward.1} parent=5 // pred_check
        %p153 = pneg %p152
      $region26: #{patch_merging_forward.1} parent=5 // pred_check_branch
        %155 = sbr.rel (%p153) target = $region28
      $region27: #{patch_merging_forward.1} parent=5 // pred_region
        // Predicated region
        $region29: #{patch_merging_forward.1} parent=27 // pred_check
          %p156 = pneg %p33
        $region30: #{patch_merging_forward.1} parent=27 // pred_check_branch
          %158 = sbr.rel (%p156) target = $region32
        $region31: #{patch_merging_forward.1} parent=27 // pred_region
          %s159 = smul.u32 8, %s13
          %p160 = scmp.lt.s32.totalorder %s159, 15
          %s161 = scalar_select %p160, %s159, 15
          %s162 = smul.addr %s161, 2
          %s163 = smul.addr %s162, 8
          %s164 = scalar_lea.vmem %s0, %s163
          %s165 = smul.u32 8, %s13
        $region32: #{patch_merging_forward.1} parent=27 // pred_fallthru
          _
      $region28: #{patch_merging_forward.1} parent=5 // pred_fallthru
        _
      %p166 = scmp.le.s32.totalorder 1, %s13
      %p167 = scmp.lt.s32.totalorder %s13, 3
      %p168 = pnand %p166, %p167
      %p169 = pneg %p168
      // Predicated region
      $region33: #{patch_merging_forward.1} parent=5 // pred_check
        _
      $region34: #{patch_merging_forward.1} parent=5 // pred_check_branch
        %171 = sbr.rel (%p168) target = $region36
      $region35: #{patch_merging_forward.1} parent=5 // pred_region
        %s172 = ssub.s32 %s13, 1
        %s173 = smul.u32 8, %s18
        %p174 = scmp.lt.s32.totalorder %s173, 15
        %s175 = scalar_select %p174, %s173, 15
        %s176 = smul.addr %s175, 2
        %s177 = smul.addr %s176, 8
        %s178 = scalar_lea.vmem %s0, %s177
        %p179 = pneg %p39
        %p180 = pneg %p36
        %p181 = pneg %p60
        %p182 = pneg %p57
        %p183 = pneg %p81
        %p184 = pneg %p78
        %p185 = pneg %p102
        %p186 = pneg %p99
        %p187 = pneg %p128
        %p188 = pneg %p125
        %s189 = sand.u32 %s115, 1
        %s190 = scalar_lea.sflag [#allocation3], %s189
        %s191 = sand.u32 %s115, 1
        %s192 = smul.addr %s191, 64
        %s193 = scalar_lea.vmem [#allocation2], %s192
        %s194 = smul.u32 8, %s18
        %p195 = scmp.lt.s32.totalorder %s194, 15
        %s196 = scalar_select %p195, %s194, 15
        %s197 = smul.addr %s196, 2
        %s198 = smul.addr %s197, 8
        %s199 = scalar_lea.vmem %s0, %s198
        %s200 = smul.u32 8, %s18
        %s201 = smul.u32 8, %s18
        %v203 = vld [vmem:[%s199] sm:$0xff]
        %v204 = vld [vmem:[%s199 + $0x10] sm:$0xff]
        %v205 = vld [vmem:[%s199 + $0x20] sm:$0xff]
        %v206 = vld [vmem:[%s199 + $0x30] sm:$0xff]
        %v207 = vld [vmem:[%s199 + $0x40] sm:$0xff]
        %v208 = vld [vmem:[%s199 + $0x50] sm:$0xff]
        %v209 = vld [vmem:[%s199 + $0x60] sm:$0xff]
        %v210 = vld [vmem:[%s199 + $0x70] sm:$0xff]
        %s211 = scalar_lea.vmem %s199, 8
        %v212 = vld [vmem:[%s211] sm:$0xff]
        %v213 = vld [vmem:[%s211 + $0x10] sm:$0xff]
        %v214 = vld [vmem:[%s211 + $0x20] sm:$0xff]
        %v215 = vld [vmem:[%s211 + $0x30] sm:$0xff]
        %v216 = vld [vmem:[%s211 + $0x40] sm:$0xff]
        %v217 = vld [vmem:[%s211 + $0x50] sm:$0xff]
        %v218 = vld [vmem:[%s211 + $0x60] sm:$0xff]
        %v219 = vld [vmem:[%s211 + $0x70] sm:$0xff]
        %vm220 = vcmask 523264
        %v221 = vsel %vm220, %v203, 0.0
        %222 = vadd.xlane.f32.xlu0 %v221
        %v223 = vpop.xlane.xlu0 %222
        %v224 = vsel %vm220, %v204, 0.0
        %225 = vadd.xlane.f32.xlu0 %v224
        %v226 = vpop.xlane.xlu0 %225
        %v227 = vsel %vm220, %v205, 0.0
        %228 = vadd.xlane.f32.xlu0 %v227
        %v229 = vpop.xlane.xlu0 %228
        %v230 = vsel %vm220, %v206, 0.0
        %231 = vadd.xlane.f32.xlu0 %v230
        %v232 = vpop.xlane.xlu0 %231
        %v233 = vsel %vm220, %v207, 0.0
        %234 = vadd.xlane.f32.xlu0 %v233
        %v235 = vpop.xlane.xlu0 %234
        %v236 = vsel %vm220, %v208, 0.0
        %237 = vadd.xlane.f32.xlu0 %v236
        %v238 = vpop.xlane.xlu0 %237
        %v239 = vsel %vm220, %v209, 0.0
        %240 = vadd.xlane.f32.xlu0 %v239
        %v241 = vpop.xlane.xlu0 %240
        %v242 = vsel %vm220, %v210, 0.0
        %243 = vadd.xlane.f32.xlu0 %v242
        %v244 = vpop.xlane.xlu0 %243
        %v245 = vsel %vm220, %v212, 0.0
        %246 = vadd.xlane.f32.xlu0 %v245
        %v247 = vpop.xlane.xlu0 %246
        %v248 = vsel %vm220, %v213, 0.0
        %249 = vadd.xlane.f32.xlu0 %v248
        %v250 = vpop.xlane.xlu0 %249
        %v251 = vsel %vm220, %v214, 0.0
        %252 = vadd.xlane.f32.xlu0 %v251
        %v253 = vpop.xlane.xlu0 %252
        %v254 = vsel %vm220, %v215, 0.0
        %255 = vadd.xlane.f32.xlu0 %v254
        %v256 = vpop.xlane.xlu0 %255
        %v257 = vsel %vm220, %v216, 0.0
        %258 = vadd.xlane.f32.xlu0 %v257
        %v259 = vpop.xlane.xlu0 %258
        %v260 = vsel %vm220, %v217, 0.0
        %261 = vadd.xlane.f32.xlu0 %v260
        %v262 = vpop.xlane.xlu0 %261
        %v263 = vsel %vm220, %v218, 0.0
        %264 = vadd.xlane.f32.xlu0 %v263
        %v265 = vpop.xlane.xlu0 %264
        %v266 = vsel %vm220, %v219, 0.0
        %267 = vadd.xlane.f32.xlu0 %v266
        %v268 = vpop.xlane.xlu0 %267
        %v269 = vadd.f32 %v223, %v247
        %v270 = vadd.f32 %v226, %v250
        %v271 = vadd.f32 %v229, %v253
        %v272 = vadd.f32 %v232, %v256
        %v273 = vadd.f32 %v235, %v259
        %v274 = vadd.f32 %v238, %v262
        %v275 = vadd.f32 %v241, %v265
        %v276 = vadd.f32 %v244, %v268
        %v277 = vmul.f32 %v269, 0.0078125
        %v278 = vmul.f32 %v270, 0.0078125
        %v279 = vmul.f32 %v271, 0.0078125
        %v280 = vmul.f32 %v272, 0.0078125
        %v281 = vmul.f32 %v273, 0.0078125
        %v282 = vmul.f32 %v274, 0.0078125
        %v283 = vmul.f32 %v275, 0.0078125
        %v284 = vmul.f32 %v276, 0.0078125
        %v285 = vsub.f32 %v203, %v277
        %v286 = vsub.f32 %v204, %v278
        %v287 = vsub.f32 %v205, %v279
        %v288 = vsub.f32 %v206, %v280
        %v289 = vsub.f32 %v207, %v281
        %v290 = vsub.f32 %v208, %v282
        %v291 = vsub.f32 %v209, %v283
        %v292 = vsub.f32 %v210, %v284
        %v293 = vsub.f32 %v212, %v277
        %v294 = vsub.f32 %v213, %v278
        %v295 = vsub.f32 %v214, %v279
        %v296 = vsub.f32 %v215, %v280
        %v297 = vsub.f32 %v216, %v281
        %v298 = vsub.f32 %v217, %v282
        %v299 = vsub.f32 %v218, %v283
        %v300 = vsub.f32 %v219, %v284
        %v301 = vmul.f32 %v285, %v285
        %v302 = vmul.f32 %v286, %v286
        %v303 = vmul.f32 %v287, %v287
        %v304 = vmul.f32 %v288, %v288
        %v305 = vmul.f32 %v289, %v289
        %v306 = vmul.f32 %v290, %v290
        %v307 = vmul.f32 %v291, %v291
        %v308 = vmul.f32 %v292, %v292
        %v309 = vsel %vm220, %v301, 0.0
        %310 = vadd.xlane.f32.xlu0 %v309
        %v311 = vpop.xlane.xlu0 %310
        %v312 = vsel %vm220, %v302, 0.0
        %313 = vadd.xlane.f32.xlu0 %v312
        %v314 = vpop.xlane.xlu0 %313
        %v315 = vsel %vm220, %v303, 0.0
        %316 = vadd.xlane.f32.xlu0 %v315
        %v317 = vpop.xlane.xlu0 %316
        %v318 = vsel %vm220, %v304, 0.0
        %319 = vadd.xlane.f32.xlu0 %v318
        %v320 = vpop.xlane.xlu0 %319
        %v321 = vsel %vm220, %v305, 0.0
        %322 = vadd.xlane.f32.xlu0 %v321
        %v323 = vpop.xlane.xlu0 %322
        %v324 = vsel %vm220, %v306, 0.0
        %325 = vadd.xlane.f32.xlu0 %v324
        %v326 = vpop.xlane.xlu0 %325
        %v327 = vsel %vm220, %v307, 0.0
        %328 = vadd.xlane.f32.xlu0 %v327
        %v329 = vpop.xlane.xlu0 %328
        %v330 = vsel %vm220, %v308, 0.0
        %331 = vadd.xlane.f32.xlu0 %v330
        %v332 = vpop.xlane.xlu0 %331
        %v333 = vmul.f32 %v293, %v293
        %v334 = vmul.f32 %v294, %v294
        %v335 = vmul.f32 %v295, %v295
        %v336 = vmul.f32 %v296, %v296
        %v337 = vmul.f32 %v297, %v297
        %v338 = vmul.f32 %v298, %v298
        %v339 = vmul.f32 %v299, %v299
        %v340 = vmul.f32 %v300, %v300
        %v341 = vsel %vm220, %v333, 0.0
        %342 = vadd.xlane.f32.xlu0 %v341
        %v343 = vpop.xlane.xlu0 %342
        %v344 = vsel %vm220, %v334, 0.0
        %345 = vadd.xlane.f32.xlu0 %v344
        %v346 = vpop.xlane.xlu0 %345
        %v347 = vsel %vm220, %v335, 0.0
        %348 = vadd.xlane.f32.xlu0 %v347
        %v349 = vpop.xlane.xlu0 %348
        %v350 = vsel %vm220, %v336, 0.0
        %351 = vadd.xlane.f32.xlu0 %v350
        %v352 = vpop.xlane.xlu0 %351
        %v353 = vsel %vm220, %v337, 0.0
        %354 = vadd.xlane.f32.xlu0 %v353
        %v355 = vpop.xlane.xlu0 %354
        %v356 = vsel %vm220, %v338, 0.0
        %357 = vadd.xlane.f32.xlu0 %v356
        %v358 = vpop.xlane.xlu0 %357
        %v359 = vsel %vm220, %v339, 0.0
        %360 = vadd.xlane.f32.xlu0 %v359
        %v361 = vpop.xlane.xlu0 %360
        %v362 = vsel %vm220, %v340, 0.0
        %363 = vadd.xlane.f32.xlu0 %v362
        %v364 = vpop.xlane.xlu0 %363
        %v365 = vadd.f32 %v311, %v343
        %v366 = vadd.f32 %v314, %v346
        %v367 = vadd.f32 %v317, %v349
        %v368 = vadd.f32 %v320, %v352
        %v369 = vadd.f32 %v323, %v355
        %v370 = vadd.f32 %v326, %v358
        %v371 = vadd.f32 %v329, %v361
        %v372 = vadd.f32 %v332, %v364
        %v373 = vmul.f32 %v365, 0.0078125
        %v374 = vmul.f32 %v366, 0.0078125
        %v375 = vmul.f32 %v367, 0.0078125
        %v376 = vmul.f32 %v368, 0.0078125
        %v377 = vmul.f32 %v369, 0.0078125
        %v378 = vmul.f32 %v370, 0.0078125
        %v379 = vmul.f32 %v371, 0.0078125
        %v380 = vmul.f32 %v372, 0.0078125
        %v381 = vadd.f32 %v373, 1e-05
        %v382 = vadd.f32 %v374, 1e-05
        %v383 = vadd.f32 %v375, 1e-05
        %v384 = vadd.f32 %v376, 1e-05
        %v385 = vadd.f32 %v377, 1e-05
        %v386 = vadd.f32 %v378, 1e-05
        %v387 = vadd.f32 %v379, 1e-05
        %v388 = vadd.f32 %v380, 1e-05
        %v389 = vrsqrt.pop %v381
        %v390 = vrsqrt.pop %v382
        %v391 = vrsqrt.pop %v383
        %v392 = vrsqrt.pop %v384
        %v393 = vrsqrt.pop %v385
        %v394 = vrsqrt.pop %v386
        %v395 = vrsqrt.pop %v387
        %v396 = vrsqrt.pop %v388
        %v397 = vmul.f32 %v285, %v389
        %v398 = vmul.f32 %v286, %v390
        %v399 = vmul.f32 %v287, %v391
        %v400 = vmul.f32 %v288, %v392
        %v401 = vmul.f32 %v289, %v393
        %v402 = vmul.f32 %v290, %v394
        %v403 = vmul.f32 %v291, %v395
        %v404 = vmul.f32 %v292, %v396
        %v405 = vpack.c.bf16 %v398, %v397
        %v406 = vpack.c.bf16 %v400, %v399
        %v407 = vpack.c.bf16 %v402, %v401
        %v408 = vpack.c.bf16 %v404, %v403
        %v409 = vmul.f32 %v293, %v389
        %v410 = vmul.f32 %v294, %v390
        %v411 = vmul.f32 %v295, %v391
        %v412 = vmul.f32 %v296, %v392
        %v413 = vmul.f32 %v297, %v393
        %v414 = vmul.f32 %v298, %v394
        %v415 = vmul.f32 %v299, %v395
        %v416 = vmul.f32 %v300, %v396
        %v417 = vpack.c.bf16 %v410, %v409
        %v418 = vpack.c.bf16 %v412, %v411
        %v419 = vpack.c.bf16 %v414, %v413
        %v420 = vpack.c.bf16 %v416, %v415
        %v421 = vld [vmem:[%s1] sm:$0xf]
        %v422 = vld [vmem:[%s1 + $0x4] sm:$0xf]
        %v423 = vld [vmem:[%s1 + $0x8] sm:$0xf]
        %v424 = vld [vmem:[%s1 + $0xc] sm:$0xf]
        %v425 = vld [vmem:[%s1 + $0x10] sm:$0xf]
        %v426 = vld [vmem:[%s1 + $0x14] sm:$0xf]
        %v427 = vld [vmem:[%s1 + $0x18] sm:$0xf]
        %v428 = vld [vmem:[%s1 + $0x1c] sm:$0xf]
        %v429 = vld [vmem:[%s2] sm:$0xf]
        %v430 = vld [vmem:[%s2 + $0x4] sm:$0xf]
        %v431 = vld [vmem:[%s2 + $0x8] sm:$0xf]
        %v432 = vld [vmem:[%s2 + $0xc] sm:$0xf]
        %v433 = vld [vmem:[%s2 + $0x10] sm:$0xf]
        %v434 = vld [vmem:[%s2 + $0x14] sm:$0xf]
        %v435 = vld [vmem:[%s2 + $0x18] sm:$0xf]
        %v436 = vld [vmem:[%s2 + $0x1c] sm:$0xf]
        %v445 = vunpack.c.l.b16 %v429
        %v446 = vunpack.c.l.b16 %v430
        %v447 = vunpack.c.l.b16 %v431
        %v448 = vunpack.c.l.b16 %v432
        %v449 = vunpack.c.l.b16 %v433
        %v450 = vunpack.c.l.b16 %v434
        %v451 = vunpack.c.l.b16 %v435
        %v452 = vunpack.c.l.b16 %v436
        %v453 = vpack.c.b16 %v446, %v445
        %v454 = vpack.c.b16 %v448, %v447
        %v455 = vpack.c.b16 %v450, %v449
        %v456 = vpack.c.b16 %v452, %v451
        %v462 = vsel %vm220, %v417, 0
        %v465 = vsel %vm220, %v418, 0
        %v468 = vsel %vm220, %v419, 0
        %v471 = vsel %vm220, %v420, 0
        %473 = vmatprep.subr.bf16.mxu0 0
        %474 = vmatpush1.bf16.msra.mxu0 0
        %475 = vmatprep.subr.bf16.mxu0 0
        %476 = vmatpush1.bf16.msra.mxu0 0
        %477 = vmatprep.subr.bf16.mxu0 0
        %478 = vmatpush1.bf16.msra.mxu0 0
        %479 = vmatprep.subr.bf16.mxu0 0
        %480 = vmatpush1.bf16.msra.mxu0 0
        %481 = vmatprep.subr.bf16.mxu0 0
        %482 = vmatpush1.bf16.msra.mxu0 %v456
        %483 = vmatprep.subr.bf16.mxu0 0
        %484 = vmatpush1.bf16.msra.mxu0 %v455
        %485 = vmatprep.subr.bf16.mxu0 0
        %486 = vmatpush1.bf16.msra.mxu0 %v454
        %487 = vmatprep.subr.bf16.mxu0 0
        %488 = vmatpush1.bf16.msra.mxu0 %v453
        %489 = vmatprep.subr.bf16.mxu0 0
        %490 = vmatpush2.bf16.msra.mxu0 0
        %491 = vmatprep.subr.bf16.mxu0 0
        %492 = vmatpush2.bf16.msra.mxu0 0
        %493 = vmatprep.subr.bf16.mxu0 0
        %494 = vmatpush2.bf16.msra.mxu0 0
        %495 = vmatprep.subr.bf16.mxu0 0
        %496 = vmatpush2.bf16.msra.mxu0 0
        %497 = vmatprep.subr.bf16.mxu0 0
        %498 = vmatpush2.bf16.msra.mxu0 0
        %499 = vmatprep.subr.bf16.mxu0 0
        %500 = vmatpush2.bf16.msra.mxu0 0
        %501 = vmatprep.subr.bf16.mxu0 0
        %502 = vmatpush2.bf16.msra.mxu0 0
        %503 = vmatprep.subr.bf16.mxu0 0
        %504 = vmatpush2.bf16.msra.mxu0 0
        %505 = vmatprep.mubr.bf16.mxu0 0
        %506 = vmatmul.mubr.bf16.gmra.mxu0 %v462
        %v507 = vpop.f32.mrf.mxu0
        %v508 = vadd.f32 0.0, %v507
        %v509 = vpop.f32.mrf.mxu0
        %v510 = vpop.f32.mrf.mxu0
        %v511 = vadd.f32 0.0, %v510
        %v512 = vpop.f32.mrf.mxu0
        %513 = vmatprep.mubr.bf16.mxu0 0
        %514 = vmatmul.mubr.bf16.gmra.mxu0 %v465
        %v515 = vpop.f32.mrf.mxu0
        %v516 = vadd.f32 0.0, %v515
        %v517 = vpop.f32.mrf.mxu0
        %v518 = vpop.f32.mrf.mxu0
        %v519 = vadd.f32 0.0, %v518
        %v520 = vpop.f32.mrf.mxu0
        %521 = vmatprep.mubr.bf16.mxu0 0
        %522 = vmatmul.mubr.bf16.gmra.mxu0 %v468
        %v523 = vpop.f32.mrf.mxu0
        %v524 = vadd.f32 0.0, %v523
        %v525 = vpop.f32.mrf.mxu0
        %v526 = vpop.f32.mrf.mxu0
        %v527 = vadd.f32 0.0, %v526
        %v528 = vpop.f32.mrf.mxu0
        %529 = vmatprep.mubr.bf16.mxu0 0
        %530 = vmatmul.mubr.bf16.gmra.mxu0 %v471
        %v531 = vpop.f32.mrf.mxu0
        %v532 = vadd.f32 0.0, %v531
        %v533 = vpop.f32.mrf.mxu0
        %v534 = vpop.f32.mrf.mxu0
        %v535 = vadd.f32 0.0, %v534
        %v536 = vpop.f32.mrf.mxu0
        %537 = vdwg.mxu0
        %v546 = vunpack.c.l.b16 %v421
        %v547 = vunpack.c.l.b16 %v422
        %v548 = vunpack.c.l.b16 %v423
        %v549 = vunpack.c.l.b16 %v424
        %v550 = vunpack.c.l.b16 %v425
        %v551 = vunpack.c.l.b16 %v426
        %v552 = vunpack.c.l.b16 %v427
        %v553 = vunpack.c.l.b16 %v428
        %v554 = vpack.c.b16 %v547, %v546
        %v555 = vpack.c.b16 %v549, %v548
        %v556 = vpack.c.b16 %v551, %v550
        %v557 = vpack.c.b16 %v553, %v552
        %v563 = vsel %vm220, %v405, 0
        %v566 = vsel %vm220, %v406, 0
        %v569 = vsel %vm220, %v407, 0
        %v572 = vsel %vm220, %v408, 0
        %574 = vmatprep.subr.bf16.mxu0 0
        %575 = vmatpush1.bf16.msra.mxu0 0
        %576 = vmatprep.subr.bf16.mxu0 0
        %577 = vmatpush1.bf16.msra.mxu0 0
        %578 = vmatprep.subr.bf16.mxu0 0
        %579 = vmatpush1.bf16.msra.mxu0 0
        %580 = vmatprep.subr.bf16.mxu0 0
        %581 = vmatpush1.bf16.msra.mxu0 0
        %582 = vmatprep.subr.bf16.mxu0 0
        %583 = vmatpush1.bf16.msra.mxu0 %v557
        %584 = vmatprep.subr.bf16.mxu0 0
        %585 = vmatpush1.bf16.msra.mxu0 %v556
        %586 = vmatprep.subr.bf16.mxu0 0
        %587 = vmatpush1.bf16.msra.mxu0 %v555
        %588 = vmatprep.subr.bf16.mxu0 0
        %589 = vmatpush1.bf16.msra.mxu0 %v554
        %590 = vmatprep.subr.bf16.mxu0 0
        %591 = vmatpush2.bf16.msra.mxu0 0
        %592 = vmatprep.subr.bf16.mxu0 0
        %593 = vmatpush2.bf16.msra.mxu0 0
        %594 = vmatprep.subr.bf16.mxu0 0
        %595 = vmatpush2.bf16.msra.mxu0 0
        %596 = vmatprep.subr.bf16.mxu0 0
        %597 = vmatpush2.bf16.msra.mxu0 0
        %598 = vmatprep.subr.bf16.mxu0 0
        %599 = vmatpush2.bf16.msra.mxu0 0
        %600 = vmatprep.subr.bf16.mxu0 0
        %601 = vmatpush2.bf16.msra.mxu0 0
        %602 = vmatprep.subr.bf16.mxu0 0
        %603 = vmatpush2.bf16.msra.mxu0 0
        %604 = vmatprep.subr.bf16.mxu0 0
        %605 = vmatpush2.bf16.msra.mxu0 0
        %606 = vmatprep.mubr.bf16.mxu0 0
        %607 = vmatmul.mubr.bf16.gmra.mxu0 %v563
        %v608 = vpop.f32.mrf.mxu0
        %v609 = vadd.f32 %v508, %v608
        %v610 = vpop.f32.mrf.mxu0
        %v611 = vpop.f32.mrf.mxu0
        %v612 = vadd.f32 %v511, %v611
        %v613 = vpop.f32.mrf.mxu0
        %614 = vmatprep.mubr.bf16.mxu0 0
        %615 = vmatmul.mubr.bf16.gmra.mxu0 %v566
        %v616 = vpop.f32.mrf.mxu0
        %v617 = vadd.f32 %v516, %v616
        %v618 = vpop.f32.mrf.mxu0
        %v619 = vpop.f32.mrf.mxu0
        %v620 = vadd.f32 %v519, %v619
        %v621 = vpop.f32.mrf.mxu0
        %622 = vmatprep.mubr.bf16.mxu0 0
        %623 = vmatmul.mubr.bf16.gmra.mxu0 %v569
        %v624 = vpop.f32.mrf.mxu0
        %v625 = vadd.f32 %v524, %v624
        %v626 = vpop.f32.mrf.mxu0
        %v627 = vpop.f32.mrf.mxu0
        %v628 = vadd.f32 %v527, %v627
        %v629 = vpop.f32.mrf.mxu0
        %630 = vmatprep.mubr.bf16.mxu0 0
        %631 = vmatmul.mubr.bf16.gmra.mxu0 %v572
        %v632 = vpop.f32.mrf.mxu0
        %v633 = vadd.f32 %v532, %v632
        %v634 = vpop.f32.mrf.mxu0
        %v635 = vpop.f32.mrf.mxu0
        %v636 = vadd.f32 %v535, %v635
        %v637 = vpop.f32.mrf.mxu0
        %638 = vdwg.mxu0
        %v639 = vld [vmem:[%s3] sm:$0x1]
        %v641 = vlaneseq
        %v642 = vshrl.u32 %v641, 7
        %v643 = vsub.s32 0, %v642
        %v644 = vrot.slane %v639, %v643
        %v646 = vadd.f32 %v609, %v644
        %v647 = vadd.f32 %v612, %v644
        %v648 = vadd.f32 %v617, %v644
        %v649 = vadd.f32 %v620, %v644
        %v650 = vadd.f32 %v625, %v644
        %v651 = vadd.f32 %v628, %v644
        %v652 = vadd.f32 %v633, %v644
        %v653 = vadd.f32 %v636, %v644
        %654 = vst [vmem:[%s193] sm:$0xff] %v646
        %655 = vst [vmem:[%s193 + $0x8] sm:$0xff] %v647
        %656 = vst [vmem:[%s193 + $0x10] sm:$0xff] %v648
        %657 = vst [vmem:[%s193 + $0x18] sm:$0xff] %v649
        %658 = vst [vmem:[%s193 + $0x20] sm:$0xff] %v650
        %659 = vst [vmem:[%s193 + $0x28] sm:$0xff] %v651
        %660 = vst [vmem:[%s193 + $0x30] sm:$0xff] %v652
        %661 = vst [vmem:[%s193 + $0x38] sm:$0xff] %v653
        %s662 = sand.u32 %s115, 1
        %s663 = scalar_lea.sflag [#allocation3], %s662
        %s664 = sand.u32 %s115, 1
        %s665 = smul.addr %s664, 64
        %s666 = scalar_lea.vmem [#allocation2], %s665
        // Predicated region
        $region37: #{patch_merging_forward.1} parent=35 // pred_check
          %p667 = pneg %p125
        $region38: #{patch_merging_forward.1} parent=35 // pred_check_branch
          %669 = sbr.rel (%p667) target = $region40
        $region39: #{patch_merging_forward.1} parent=35 // pred_region
          %s670 = smul.u32 8, %s18
          %s672 = ssub.s32 1024, 1024
          %673 = vsyncadd %s663, %s672
          %s674 = smul.addr %s670, 128
          %s675 = scalar_lea.hbm %s4, %s674
          %s676 = sshll.u32 %s666, 4
          %s677 = int_to_ptr.vmem [resolvable:$true] %s676
          %682 = dma.vmem_to_hbm [thread:$0]  %s677, 1024, %s675, %s663, 128, 128, 8
        $region40: #{patch_merging_forward.1} parent=35 // pred_fallthru
          _
      $region36: #{patch_merging_forward.1} parent=5 // pred_fallthru
        _
      %p683 = scmp.le.s32.totalorder 2, %s13
      // Predicated region
      $region41: #{patch_merging_forward.1} parent=5 // pred_check
        %p684 = pneg %p683
      $region42: #{patch_merging_forward.1} parent=5 // pred_check_branch
        %686 = sbr.rel (%p684) target = $region44
      $region43: #{patch_merging_forward.1} parent=5 // pred_region
        %s687 = ssub.s32 %s13, 2
        // Predicated region
        $region45: #{patch_merging_forward.1} parent=43 // pred_check
          %p688 = pneg %p131
        $region46: #{patch_merging_forward.1} parent=43 // pred_check_branch
          %690 = sbr.rel (%p688) target = $region48
        $region47: #{patch_merging_forward.1} parent=43 // pred_region
          %s691 = sand.u32 %s116, 1
          %s692 = scalar_lea.sflag [#allocation3], %s691
          %s693 = sand.u32 %s116, 1
          %s694 = smul.addr %s693, 64
          %s695 = scalar_lea.vmem [#allocation2], %s694
          %696 = dma.done %s692, 1024
        $region48: #{patch_merging_forward.1} parent=43 // pred_fallthru
          _
      $region44: #{patch_merging_forward.1} parent=5 // pred_fallthru
        _
    $region6: #{patch_merging_forward.1} parent=1 // loop_footer
      %s17 = sadd.s32 1, %s13
    $region7: #{patch_merging_forward.1} parent=1 // loop_footer_branch
      %12 = sbr.rel target = $region3
    $region8: #{patch_merging_forward.1} parent=1 // loop_exit
      _
    %697 = vsyncpa [#allocation3], 1
    %s698 = scalar_lea.sflag [#allocation3], 1
    %699 = vsyncpa %s698, 1

</llo_original>
